<compile_context>
chip_gen: v6e
topology: v6e:2x2x1
jax: 0.10.0
libtpu: 0.0.40
codegen_flags: <defaults>
</compile_context>

<pallas_src>
import functools

import jax
import jax.numpy as jnp
import numpy as np
from jax.experimental import pallas as pl
from jax.experimental.pallas import tpu as pltpu


def _round_up(v, mult):
    return ((v + mult - 1) // mult) * mult


def final_layer_kernel(x_ref, t_ref, yw_ref, neginv_ref, b_ref, o_ref, *,
                       exp_dtype):
    """One (batch, m-tile) grid step.

    x_ref      : (Np, 1)      observation locations (sublanes)
    t_ref      : (1, TM)      target locations for this m-tile (lanes)
    yw_ref     : (1, C*Np)    y * W, channel-major flattened
    neginv_ref : (C, 1)       -0.5 / exp(sigma)**2
    b_ref      : (1,)  SMEM   final Linear bias
    o_ref      : (1, TM)      output row tile (lane-dense)
    """
    x = x_ref[...]                                    # (Np, 1)
    t_row = t_ref[...]                                # (1, TM)
    dists = (x - t_row) ** 2                          # (Np, TM)

    neg_inv = neginv_ref[...]                         # (C, 1)
    # (C, Np, TM) argument slab; one broadcasted multiply feeds one exp.
    arg = dists[None, :, :] * neg_inv[:, :, None]
    wt = jnp.exp(arg.astype(exp_dtype))               # single EUP stream

    c, np_, tm = wt.shape
    wt2 = wt.reshape(c * np_, tm)                     # free merge (Np % 8 == 0)
    yw = yw_ref[...].astype(wt2.dtype)                # (1, C*Np)

    acc = jnp.dot(yw, wt2,
                  preferred_element_type=jnp.float32,
                  precision=jax.lax.Precision.HIGHEST)   # (1, TM) on the MXU
    o_ref[...] = acc + b_ref[0]


def final_layer(x, y, t, sigma, w, b, *, tm_max=512, exp_dtype=jnp.float32):
    """x: (B, n, 1), y: (B, n, C), t: (B, m, 1) -> (B, m, 1) float32."""
    B, n, _ = x.shape
    m = t.shape[1]
    C = y.shape[2]

    x = x.astype(jnp.float32)
    # Host-side precompute: RBF inverse length scales and Linear-weight fold.
    neg_inv = (-0.5 / jnp.exp(sigma.astype(jnp.float32)) ** 2).reshape(C, 1)
    yw = y.astype(jnp.float32) * w.reshape(1, 1, C).astype(jnp.float32)  # (B,n,C)

    # Pad n to a sublane multiple; zero rows in yw contribute nothing.
    n_pad = _round_up(n, 8)
    if n_pad != n:
        x = jnp.pad(x, ((0, 0), (0, n_pad - n), (0, 0)))
        yw = jnp.pad(yw, ((0, 0), (0, n_pad - n), (0, 0)))
    # Channel-major flatten so the in-kernel contraction is a plain 2-D dot.
    yw_flat = jnp.transpose(yw, (0, 2, 1)).reshape(B, 1, C * n_pad)

    # Pad m to a lane-dense multiple of 128 and pick the m-tile so the
    # (C, n_pad, TM) f32 slabs (arg + wt) stay well under the default scoped
    # VMEM limits (16/32/32 MiB on v5e/v6e/v7x).
    tm = min(_round_up(m, 128), tm_max)
    slab_budget = 8 * 1024 * 1024
    while tm > 128 and 2 * C * n_pad * tm * 4 > slab_budget:
        tm -= 128
    m_pad = _round_up(m, tm)

    t_row = jnp.transpose(t.astype(jnp.float32), (0, 2, 1))       # (B, 1, m)
    if m_pad != m:
        t_row = jnp.pad(t_row, ((0, 0), (0, 0), (0, m_pad - m)))

    bias = b.reshape(1).astype(jnp.float32)

    grid = (B, m_pad // tm)
    kernel = functools.partial(final_layer_kernel, exp_dtype=exp_dtype)

    out_row = pl.pallas_call(
        kernel,
        out_shape=jax.ShapeDtypeStruct((B, 1, m_pad), jnp.float32),
        grid=grid,
        in_specs=[
            # Batch-constant blocks: DMA'd only when the batch index changes.
            pl.BlockSpec((None, n_pad, 1), lambda bi, j: (bi, 0, 0)),      # x
            pl.BlockSpec((None, 1, tm), lambda bi, j: (bi, 0, j)),         # t tile
            pl.BlockSpec((None, 1, C * n_pad), lambda bi, j: (bi, 0, 0)),  # y*W
            pl.BlockSpec((C, 1), lambda bi, j: (0, 0)),                    # -0.5/s^2
            pl.BlockSpec(memory_space=pltpu.MemorySpace.SMEM),             # bias
        ],
        out_specs=pl.BlockSpec((None, 1, tm), lambda bi, j: (bi, 0, j)),
        compiler_params=pltpu.CompilerParams(
            dimension_semantics=("parallel", "parallel"),
            vmem_limit_bytes=32 * 1024 * 1024,
        ),
    )(x, t_row, yw_flat, neg_inv, bias)

    return jnp.transpose(out_row, (0, 2, 1))[:, :m, :]             # (B, m, 1)


def final_layer_ref(x, y, t, sigma, w, b):
    """Pure-JAX reference mirroring the PyTorch forward."""
    scales = jnp.exp(sigma)                                        # (C,)
    dists = (x - jnp.transpose(t, (0, 2, 1))) ** 2                 # (B, n, m)
    wt = jnp.exp(-0.5 * dists[..., None] / scales[None, None, None, :] ** 2)
    y_out = jnp.sum(y[:, :, None, :] * wt, axis=1)                 # (B, m, C)
    return y_out @ w.T + b                                         # (B, m, 1)


if __name__ == "__main__":
    init_length_scale = 0.5
    # (B, n, m, C): first config exercises n/m padding; second exercises
    # multiple lane-dense m-tiles per batch (grid = (2, 2)).
    configs = [(2, 7, 19, 4), (2, 40, 1000, 4)]

    for B, n, m, C in configs:
        key = jax.random.PRNGKey(0)
        k1, k2, k3, k4, k5 = jax.random.split(key, 5)
        x = jax.random.normal(k1, (B, n, 1), jnp.float32)
        y = jax.random.normal(k2, (B, n, C), jnp.float32)
        t = jax.random.normal(k3, (B, m, 1), jnp.float32)

        # Deterministic synthetic parameters (shapes from FinalLayer.__init__):
        # sigma: (C,) = log(init_length_scale); Linear(C, 1): W (1, C), b (1,)
        sigma = jnp.log(init_length_scale) * jnp.ones((C,), jnp.float32)
        w = jax.random.normal(k4, (1, C), jnp.float32) * 0.1
        b = jax.random.normal(k5, (1,), jnp.float32) * 0.1

        out = jax.block_until_ready(final_layer(x, y, t, sigma, w, b))
        ref = final_layer_ref(x, y, t, sigma, w, b)
        assert out.shape == (B, m, 1), out.shape
        np.testing.assert_allclose(np.asarray(out), np.asarray(ref),
                                   rtol=1e-4, atol=1e-4)
    print("KERNEL_OK")
</pallas_src>

<mosaic_0001>
module attributes {stable_mosaic.version = 11 : i64} {
  func.func @final_layer_kernel(%arg0: i32, %arg1: i32, %arg2: memref<1x8x1xf32, #tpu.memory_space<vmem>>, %arg3: memref<1x1x128xf32, #tpu.memory_space<vmem>>, %arg4: memref<1x1x32xf32, #tpu.memory_space<vmem>>, %arg5: memref<4x1xf32, #tpu.memory_space<vmem>>, %arg6: memref<1xf32, #tpu.memory_space<smem>>, %arg7: memref<1x1x128xf32, #tpu.memory_space<vmem>>) attributes {dimension_semantics = [#tpu.dimension_semantics<parallel>, #tpu.dimension_semantics<parallel>], iteration_bounds = array<i64: 2, 1>, scalar_prefetch = 0 : i64, scratch_operands = 0 : i64, tpu.core_type = #tpu.core_type<tc>, window_params = [{transform_indices = @transform_0, window_bounds = array<i64: 1, 8, 1>}, {transform_indices = @transform_1, window_bounds = array<i64: 1, 1, 128>}, {transform_indices = @transform_2, window_bounds = array<i64: 1, 1, 32>}, {pipeline_mode = #tpu.pipeline_mode<synchronous>, transform_indices = @transform_3, window_bounds = array<i64: 4, 1>}, {transform_indices = @transform_4, window_bounds = array<i64: 1>}, {transform_indices = @transform_5, window_bounds = array<i64: 1, 1, 128>}]} {
    %c0 = arith.constant 0 : index
    %c0_0 = arith.constant 0 : index
    %c0_1 = arith.constant 0 : index
    %0 = vector.load %arg2[%c0, %c0_0, %c0_1] : memref<1x8x1xf32, #tpu.memory_space<vmem>>, vector<1x8x1xf32>
    %1 = vector.shape_cast %0 : vector<1x8x1xf32> to vector<8x1xf32>
    %c0_2 = arith.constant 0 : index
    %c0_3 = arith.constant 0 : index
    %c0_4 = arith.constant 0 : index
    %2 = vector.load %arg3[%c0_2, %c0_3, %c0_4] : memref<1x1x128xf32, #tpu.memory_space<vmem>>, vector<1x1x128xf32>
    %3 = vector.shape_cast %2 : vector<1x1x128xf32> to vector<1x128xf32>
    %4 = vector.broadcast %1 : vector<8x1xf32> to vector<8x128xf32>
    %5 = vector.broadcast %3 : vector<1x128xf32> to vector<8x128xf32>
    %6 = arith.subf %4, %5 : vector<8x128xf32>
    %7 = arith.mulf %6, %6 : vector<8x128xf32>
    %c0_5 = arith.constant 0 : index
    %c0_6 = arith.constant 0 : index
    %8 = vector.load %arg5[%c0_5, %c0_6] : memref<4x1xf32, #tpu.memory_space<vmem>>, vector<4x1xf32>
    %9 = vector.shape_cast %7 : vector<8x128xf32> to vector<1x8x128xf32>
    %10 = vector.shape_cast %8 : vector<4x1xf32> to vector<4x1x1xf32>
    %11 = vector.broadcast %9 : vector<1x8x128xf32> to vector<4x8x128xf32>
    %12 = vector.broadcast %10 : vector<4x1x1xf32> to vector<4x8x128xf32>
    %13 = arith.mulf %11, %12 : vector<4x8x128xf32>
    %14 = math.exp %13 : vector<4x8x128xf32>
    %15 = vector.shape_cast %14 : vector<4x8x128xf32> to vector<32x128xf32>
    %c0_7 = arith.constant 0 : index
    %c0_8 = arith.constant 0 : index
    %c0_9 = arith.constant 0 : index
    %16 = vector.load %arg4[%c0_7, %c0_8, %c0_9] : memref<1x1x32xf32, #tpu.memory_space<vmem>>, vector<1x1x32xf32>
    %17 = vector.shape_cast %16 : vector<1x1x32xf32> to vector<1x32xf32>
    %cst = arith.constant dense<0.000000e+00> : vector<1x128xf32>
    %18 = tpu.matmul %17, %15, %cst {dimension_numbers = #tpu.dot_dimension_numbers<[1], [0], [0], [1], [0, 0, 1, 1], [], []>, precision = #tpu.contract_precision<fp32>} : vector<1x32xf32>, vector<32x128xf32>, vector<1x128xf32> -> vector<1x128xf32>
    %c0_10 = arith.constant 0 : index
    %19 = memref.load %arg6[%c0_10] : memref<1xf32, #tpu.memory_space<smem>>
    %20 = vector.broadcast %19 : f32 to vector<1x128xf32>
    %21 = arith.addf %18, %20 : vector<1x128xf32>
    %c0_11 = arith.constant 0 : index
    %c0_12 = arith.constant 0 : index
    %c0_13 = arith.constant 0 : index
    %22 = vector.load %arg7[%c0_11, %c0_12, %c0_13] : memref<1x1x128xf32, #tpu.memory_space<vmem>>, vector<1x1x128xf32>
    %23 = vector.shape_cast %22 : vector<1x1x128xf32> to vector<1x128xf32>
    %24 = vector.shape_cast %21 : vector<1x128xf32> to vector<1x1x128xf32>
    tpu.vector_store %arg7[%c0_11, %c0_12, %c0_13], %24 {strides = array<i32>} : memref<1x1x128xf32, #tpu.memory_space<vmem>>, vector<1x1x128xf32>,
    return
  }
  func.func @transform_0(%arg0: i32, %arg1: i32) -> (i32, i32, i32) {
    %c0_i32 = arith.constant 0 : i32
    %c0_i32_0 = arith.constant 0 : i32
    %c0_i32_1 = arith.constant 0 : i32
    return %arg0, %c0_i32, %c0_i32_0 : i32, i32, i32
  }
  func.func @transform_1(%arg0: i32, %arg1: i32) -> (i32, i32, i32) {
    %c0_i32 = arith.constant 0 : i32
    %c0_i32_0 = arith.constant 0 : i32
    return %arg0, %c0_i32, %arg1 : i32, i32, i32
  }
  func.func @transform_2(%arg0: i32, %arg1: i32) -> (i32, i32, i32) {
    %c0_i32 = arith.constant 0 : i32
    %c0_i32_0 = arith.constant 0 : i32
    %c0_i32_1 = arith.constant 0 : i32
    return %arg0, %c0_i32, %c0_i32_0 : i32, i32, i32
  }
  func.func @transform_3(%arg0: i32, %arg1: i32) -> (i32, i32) {
    %c0_i32 = arith.constant 0 : i32
    %c0_i32_0 = arith.constant 0 : i32
    %c0_i32_1 = arith.constant 0 : i32
    return %c0_i32, %c0_i32_0 : i32, i32
  }
  func.func @transform_4(%arg0: i32, %arg1: i32) -> i32 {
    %c0_i32 = arith.constant 0 : i32
    %c0_i32_0 = arith.constant 0 : i32
    return %c0_i32 : i32
  }
  func.func @transform_5(%arg0: i32, %arg1: i32) -> (i32, i32, i32) {
    %c0_i32 = arith.constant 0 : i32
    %c0_i32_0 = arith.constant 0 : i32
    return %arg0, %c0_i32, %arg1 : i32, i32, i32
  }
}

</mosaic_0001>

<llo_original>
// kernel: tpu_custom_call.1
$region0: #{tpu_custom_call.1}
  #allocation0 [shape = 'u32[]', space=smem, size = 0x4, offset = 0x4, fixed_abs, tag = 'smem constant byte address 0x4 - core index']
  #allocation1 [shape = 'u32[144,128]{1,0:T(1,128)}', space=vmem, size = 0x12000, scoped, tag = 'internal scratch']
  #allocation2 [shape = 'f32[1]{0:T(128)S(6)}', space=smem, size = 0x200, scoped, tag = 'scoped memory for tpu_custom_call.1']
  %s0 = inlined_call_operand.vmem [shape: f32[2,8,1], index: 0, kind: input, shape index: {}]
  %s1 = inlined_call_operand.vmem [shape: f32[2,1,128], index: 1, kind: input, shape index: {}]
  %s2 = inlined_call_operand.vmem [shape: f32[2,1,32], index: 2, kind: input, shape index: {}]
  %s3 = inlined_call_operand.vmem [shape: f32[4,1], index: 3, kind: input, shape index: {}]
  %s4 = inlined_call_operand.<no memory space> [shape: f32[1], index: 4, kind: input, shape index: {}]
  %s5 = inlined_call_operand.hbm [shape: f32[2,1,128], index: 5, kind: output, shape index: {}]
  %s6 = sld [smem:[#allocation0]]
  $region53: #{tpu_custom_call.1} parent=0
    _
  %s8 = ssub.s32 1, %s6
  %s9 = scalar_select 0, %s8, %s6
  %10 = sst [smem:[#allocation2]] %s4
  $region1: #{tpu_custom_call.1} parent=0
    #allocation3 [shape = 'u8[1024]{0}', space=vmem, size = 0x400, scoped, tag = 'output window, operand 0']
    #allocation4 [shape = 's32[2]{0}', space=sflag, size = 0x8, scoped, tag = 'scoped memory for tpu_custom_call.1']
    %11 = vsyncpa [#allocation4], 0
    %s12 = scalar_lea.sflag [#allocation4], 1
    %13 = vsyncpa %s12, 0
    loop: start=0, step=1, limit=4
    $region2: #{tpu_custom_call.1} parent=1 // loop_pre_header
      _
    $region3: #{tpu_custom_call.1} parent=1 // loop_header
      %s15 = sphi 0, %s19
      %p16 = scmp.ge.s32.totalorder %s15, 4
      %s22 = sphi 0, %s34
      %s23 = sphi 0, %s30
      %s24 = sphi 0, %s22
      %s25 = sphi 0, %s23
      %s26 = sphi 0, %s24
      %s27 = sphi 0, %s25
      %s37 = sphi 0, %s39
      %s40 = sphi 0, %s37
      %s41 = sphi 0, %s40
      %s57 = sphi 0, %s41
      %s65 = sphi 0, %s67
      %s68 = sphi 0, %s65
      %s69 = sphi 0, %s68
      %s85 = sphi 0, %s69
      %s91 = sphi 0, %s93
      %s94 = sphi 0, %s91
      %s95 = sphi 0, %s94
      %s111 = sphi 0, %s95
      %s115 = sphi 0, %s115
      %s117 = sphi 0, %s115
      %s118 = sphi 0, %s117
      %s132 = sphi 0, %s118
      %s136 = sphi 0, %s136
      %s138 = sphi 0, %s136
      %s139 = sphi 0, %s138
      %s153 = sphi 0, %s139
      %s161 = sphi 0, %s163
      %s164 = sphi 0, %s161
      %s165 = sphi 0, %s164
      %s181 = sphi 0, %s165
    $region4: #{tpu_custom_call.1} parent=1 // loop_header_branch
      %18 = sbr.rel (%p16) target = $region8
    $region5: #{tpu_custom_call.1} parent=1 // loop_body
      %s20 = ssub.s32 %s15, 1
      %s21 = ssub.s32 %s15, 2
      %s28 = sadd.s32 1, %s23
      %p29 = scmp.ge.s32.totalorder %s28, 1
      %s30 = scalar_select %p29, 0, %s28
      %s31 = sadd.s32 1, %s22
      %s32 = scalar_select %p29, %s31, %s22
      %p33 = scmp.ge.s32.totalorder %s32, 2
      %s34 = scalar_select %p33, 0, %s32
      %s35 = ssub.s32 %s22, %s34
      %p36 = scmp.eq.s32.totalorder %s35, 0
      %s38 = sadd.s32 %s37, 1
      %s39 = scalar_select %p36, %s37, %s38
      %p42 = pneg %p36
      %p43 = scmp.eq.s32.totalorder %s15, 1
      %p44 = por %p42, %p43
      %p45 = scmp.ne.s32.totalorder %s37, %s40
      %p46 = scmp.eq.s32.totalorder %s15, 0
      %p47 = por %p45, %p46
      %p48 = scmp.ne.s32.totalorder %s37, %s40
      %p49 = scmp.eq.s32.totalorder %s20, 1
      %p50 = por %p48, %p49
      %p51 = scmp.ne.s32.totalorder %s40, %s41
      %p52 = scmp.eq.s32.totalorder %s20, 0
      %p53 = por %p51, %p52
      %p54 = scmp.ne.s32.totalorder %s40, %s41
      %p55 = scmp.eq.s32.totalorder %s21, 1
      %p56 = por %p54, %p55
      %p58 = scmp.ne.s32.totalorder %s41, %s57
      %p59 = scmp.eq.s32.totalorder %s21, 0
      %p60 = por %p58, %p59
      %s61 = ssub.s32 %s22, %s34
      %s62 = ssub.s32 %s23, %s30
      %s63 = sor.u32 %s61, %s62
      %p64 = scmp.eq.s32.totalorder %s63, 0
      %s66 = sadd.s32 %s65, 1
      %s67 = scalar_select %p64, %s65, %s66
      %p70 = pneg %p64
      %p71 = scmp.eq.s32.totalorder %s15, 1
      %p72 = por %p70, %p71
      %p73 = scmp.ne.s32.totalorder %s65, %s68
      %p74 = scmp.eq.s32.totalorder %s15, 0
      %p75 = por %p73, %p74
      %p76 = scmp.ne.s32.totalorder %s65, %s68
      %p77 = scmp.eq.s32.totalorder %s20, 1
      %p78 = por %p76, %p77
      %p79 = scmp.ne.s32.totalorder %s68, %s69
      %p80 = scmp.eq.s32.totalorder %s20, 0
      %p81 = por %p79, %p80
      %p82 = scmp.ne.s32.totalorder %s68, %s69
      %p83 = scmp.eq.s32.totalorder %s21, 1
      %p84 = por %p82, %p83
      %p86 = scmp.ne.s32.totalorder %s69, %s85
      %p87 = scmp.eq.s32.totalorder %s21, 0
      %p88 = por %p86, %p87
      %s89 = ssub.s32 %s22, %s34
      %p90 = scmp.eq.s32.totalorder %s89, 0
      %s92 = sadd.s32 %s91, 1
      %s93 = scalar_select %p90, %s91, %s92
      %p96 = pneg %p90
      %p97 = scmp.eq.s32.totalorder %s15, 1
      %p98 = por %p96, %p97
      %p99 = scmp.ne.s32.totalorder %s91, %s94
      %p100 = scmp.eq.s32.totalorder %s15, 0
      %p101 = por %p99, %p100
      %p102 = scmp.ne.s32.totalorder %s91, %s94
      %p103 = scmp.eq.s32.totalorder %s20, 1
      %p104 = por %p102, %p103
      %p105 = scmp.ne.s32.totalorder %s94, %s95
      %p106 = scmp.eq.s32.totalorder %s20, 0
      %p107 = por %p105, %p106
      %p108 = scmp.ne.s32.totalorder %s94, %s95
      %p109 = scmp.eq.s32.totalorder %s21, 1
      %p110 = por %p108, %p109
      %p112 = scmp.ne.s32.totalorder %s95, %s111
      %p113 = scmp.eq.s32.totalorder %s21, 0
      %p114 = por %p112, %p113
      %s116 = sadd.s32 %s115, 1
      %p119 = scmp.eq.s32.totalorder %s15, 1
      %p120 = scmp.ne.s32.totalorder %s115, %s117
      %p121 = scmp.eq.s32.totalorder %s15, 0
      %p122 = por %p120, %p121
      %p123 = scmp.ne.s32.totalorder %s115, %s117
      %p124 = scmp.eq.s32.totalorder %s20, 1
      %p125 = por %p123, %p124
      %p126 = scmp.ne.s32.totalorder %s117, %s118
      %p127 = scmp.eq.s32.totalorder %s20, 0
      %p128 = por %p126, %p127
      %p129 = scmp.ne.s32.totalorder %s117, %s118
      %p130 = scmp.eq.s32.totalorder %s21, 1
      %p131 = por %p129, %p130
      %p133 = scmp.ne.s32.totalorder %s118, %s132
      %p134 = scmp.eq.s32.totalorder %s21, 0
      %p135 = por %p133, %p134
      %s137 = sadd.s32 %s136, 1
      %p140 = scmp.eq.s32.totalorder %s15, 1
      %p141 = scmp.ne.s32.totalorder %s136, %s138
      %p142 = scmp.eq.s32.totalorder %s15, 0
      %p143 = por %p141, %p142
      %p144 = scmp.ne.s32.totalorder %s136, %s138
      %p145 = scmp.eq.s32.totalorder %s20, 1
      %p146 = por %p144, %p145
      %p147 = scmp.ne.s32.totalorder %s138, %s139
      %p148 = scmp.eq.s32.totalorder %s20, 0
      %p149 = por %p147, %p148
      %p150 = scmp.ne.s32.totalorder %s138, %s139
      %p151 = scmp.eq.s32.totalorder %s21, 1
      %p152 = por %p150, %p151
      %p154 = scmp.ne.s32.totalorder %s139, %s153
      %p155 = scmp.eq.s32.totalorder %s21, 0
      %p156 = por %p154, %p155
      %s157 = ssub.s32 %s22, %s34
      %s158 = ssub.s32 %s23, %s30
      %s159 = sor.u32 %s157, %s158
      %p160 = scmp.eq.s32.totalorder %s159, 0
      %s162 = sadd.s32 %s161, 1
      %s163 = scalar_select %p160, %s161, %s162
      %p166 = pneg %p160
      %p167 = scmp.eq.s32.totalorder %s15, 1
      %p168 = por %p166, %p167
      %p169 = scmp.ne.s32.totalorder %s161, %s164
      %p170 = scmp.eq.s32.totalorder %s15, 0
      %p171 = por %p169, %p170
      %p172 = scmp.ne.s32.totalorder %s161, %s164
      %p173 = scmp.eq.s32.totalorder %s20, 1
      %p174 = por %p172, %p173
      %p175 = scmp.ne.s32.totalorder %s164, %s165
      %p176 = scmp.eq.s32.totalorder %s20, 0
      %p177 = por %p175, %p176
      %p178 = scmp.ne.s32.totalorder %s164, %s165
      %p179 = scmp.eq.s32.totalorder %s21, 1
      %p180 = por %p178, %p179
      %p182 = scmp.ne.s32.totalorder %s165, %s181
      %p183 = scmp.eq.s32.totalorder %s21, 0
      %p184 = por %p182, %p183
      %p185 = scmp.le.s32.totalorder 1, %s15
      %p186 = scmp.lt.s32.totalorder %s15, 3
      %p187 = pnand %p185, %p186
      %p188 = pneg %p187
      // Predicated region
      $region9: #{tpu_custom_call.1} parent=5 // pred_check
        _
      $region10: #{tpu_custom_call.1} parent=5 // pred_check_branch
        %190 = sbr.rel (%p187) target = $region12
      $region11: #{tpu_custom_call.1} parent=5 // pred_region
        %s191 = ssub.s32 %s15, 1
        // Predicated region
        $region13: #{tpu_custom_call.1} parent=11 // pred_check
          %p192 = pneg %p128
        $region14: #{tpu_custom_call.1} parent=11 // pred_check_branch
          %194 = sbr.rel (%p192) target = $region16
        $region15: #{tpu_custom_call.1} parent=11 // pred_region
          _
        $region16: #{tpu_custom_call.1} parent=11 // pred_fallthru
          _
        // Predicated region
        $region17: #{tpu_custom_call.1} parent=11 // pred_check
          %p195 = pneg %p149
        $region18: #{tpu_custom_call.1} parent=11 // pred_check_branch
          %197 = sbr.rel (%p195) target = $region20
        $region19: #{tpu_custom_call.1} parent=11 // pred_region
          _
        $region20: #{tpu_custom_call.1} parent=11 // pred_fallthru
          _
      $region12: #{tpu_custom_call.1} parent=5 // pred_fallthru
        _
      %p198 = scmp.lt.s32.totalorder %s15, 2
      // Predicated region
      $region21: #{tpu_custom_call.1} parent=5 // pred_check
        %p199 = pneg %p198
      $region22: #{tpu_custom_call.1} parent=5 // pred_check_branch
        %201 = sbr.rel (%p199) target = $region24
      $region23: #{tpu_custom_call.1} parent=5 // pred_region
        // Predicated region
        $region25: #{tpu_custom_call.1} parent=23 // pred_check
          %p202 = pneg %p47
        $region26: #{tpu_custom_call.1} parent=23 // pred_check_branch
          %204 = sbr.rel (%p202) target = $region28
        $region27: #{tpu_custom_call.1} parent=23 // pred_region
          %p205 = scmp.lt.s32.totalorder %s22, 1
          %s206 = scalar_select %p205, %s22, 1
          %s207 = smul.addr %s206, 8
          %s208 = scalar_lea.vmem %s0, %s207
        $region28: #{tpu_custom_call.1} parent=23 // pred_fallthru
          _
        // Predicated region
        $region29: #{tpu_custom_call.1} parent=23 // pred_check
          %p209 = pneg %p75
        $region30: #{tpu_custom_call.1} parent=23 // pred_check_branch
          %211 = sbr.rel (%p209) target = $region32
        $region31: #{tpu_custom_call.1} parent=23 // pred_region
          %p212 = scmp.lt.s32.totalorder %s22, 1
          %s213 = scalar_select %p212, %s22, 1
          %p214 = scmp.lt.s32.totalorder %s23, 0
          %s215 = scalar_select %p214, %s23, 0
          %s216 = sadd.s32 %s215, %s213
          %s217 = scalar_lea.vmem %s1, %s216
        $region32: #{tpu_custom_call.1} parent=23 // pred_fallthru
          _
        // Predicated region
        $region33: #{tpu_custom_call.1} parent=23 // pred_check
          %p218 = pneg %p101
        $region34: #{tpu_custom_call.1} parent=23 // pred_check_branch
          %220 = sbr.rel (%p218) target = $region36
        $region35: #{tpu_custom_call.1} parent=23 // pred_region
          %p221 = scmp.lt.s32.totalorder %s22, 1
          %s222 = scalar_select %p221, %s22, 1
          %s223 = scalar_lea.vmem %s2, %s222
        $region36: #{tpu_custom_call.1} parent=23 // pred_fallthru
          _
      $region24: #{tpu_custom_call.1} parent=5 // pred_fallthru
        _
      %p224 = scmp.le.s32.totalorder 1, %s15
      %p225 = scmp.lt.s32.totalorder %s15, 3
      %p226 = pnand %p224, %p225
      %p227 = pneg %p226
      // Predicated region
      $region37: #{tpu_custom_call.1} parent=5 // pred_check
        _
      $region38: #{tpu_custom_call.1} parent=5 // pred_check_branch
        %229 = sbr.rel (%p226) target = $region40
      $region39: #{tpu_custom_call.1} parent=5 // pred_region
        %s230 = ssub.s32 %s15, 1
        %p231 = scmp.lt.s32.totalorder %s24, 1
        %s232 = scalar_select %p231, %s24, 1
        %s233 = smul.addr %s232, 8
        %s234 = scalar_lea.vmem %s0, %s233
        %p235 = pneg %p53
        %p236 = pneg %p50
        %p237 = scmp.lt.s32.totalorder %s24, 1
        %s238 = scalar_select %p237, %s24, 1
        %p239 = scmp.lt.s32.totalorder %s25, 0
        %s240 = scalar_select %p239, %s25, 0
        %s241 = sadd.s32 %s240, %s238
        %s242 = scalar_lea.vmem %s1, %s241
        %p243 = pneg %p81
        %p244 = pneg %p78
        %p245 = scmp.lt.s32.totalorder %s24, 1
        %s246 = scalar_select %p245, %s24, 1
        %s247 = scalar_lea.vmem %s2, %s246
        %p248 = pneg %p107
        %p249 = pneg %p104
        %p250 = pneg %p128
        %p251 = pneg %p125
        %p252 = pneg %p149
        %p253 = pneg %p146
        %p254 = pneg %p177
        %p255 = pneg %p174
        %s256 = sand.u32 %s164, 1
        %s257 = scalar_lea.sflag [#allocation4], %s256
        %s258 = sand.u32 %s164, 1
        %s259 = scalar_lea.vmem [#allocation3], %s258
        %p260 = scmp.lt.s32.totalorder %s24, 1
        %s261 = scalar_select %p260, %s24, 1
        %s262 = smul.addr %s261, 8
        %s263 = scalar_lea.vmem %s0, %s262
        %p264 = scmp.lt.s32.totalorder %s24, 1
        %s265 = scalar_select %p264, %s24, 1
        %p266 = scmp.lt.s32.totalorder %s25, 0
        %s267 = scalar_select %p266, %s25, 0
        %s268 = sadd.s32 %s267, %s265
        %s269 = scalar_lea.vmem %s1, %s268
        %p270 = scmp.lt.s32.totalorder %s24, 1
        %s271 = scalar_select %p270, %s24, 1
        %s272 = scalar_lea.vmem %s2, %s271
        %v273 = vld [vmem:[%s263] sm:$0xff]
        %v274 = vld [vmem:[%s269] sm:$0x1]
        %276 = vset.pattern.permute.xlu0 0
        %277 = vperm.xlu0 %276, %v273
        %v278 = vpop.permute.xlu0 %277
        %v281 = vlaneseq
        %v282 = vshrl.u32 %v281, 7
        %v283 = vsub.s32 0, %v282
        %v284 = vrot.slane %v274, %v283
        %v286 = vsub.f32 %v278, %v284
        %v287 = vmul.f32 %v286, %v286
        %v288 = vld [vmem:[%s3] sm:$0xf]
        %v291 = vunpack.c.l.s4 1966171168
        %v292 = vunpack.c.0.s8 %v291
        %v293 = vlaneseq
        %v294 = vshrl.u32 %v293, 7
        %v295 = vsub.s32 %v292, %v294
        %v296 = vrot.slane %v288, %v295
        %v297 = vcombine.high %v296, %v296
        %v299 = vunpack.c.l.s4 1966171168
        %v300 = vunpack.c.0.s8 %v299
        %v301 = vlaneseq
        %v302 = vshrl.u32 %v301, 7
        %v303 = vsub.s32 %v300, %v302
        %v304 = vrot.slane %v296, %v303
        %v306 = vunpack.c.l.s4 1966171168
        %v307 = vunpack.c.0.s8 %v306
        %v308 = vlaneseq
        %v309 = vshrl.u32 %v308, 7
        %v310 = vsub.s32 %v307, %v309
        %v311 = vrot.slane %v297, %v310
        %v312 = vcombine.high %v304, %v304
        %v313 = vcombine.high %v311, %v311
        %v314 = vlaneseq
        %v315 = vshrl.u32 %v314, 7
        %v316 = vsub.s32 0, %v315
        %v317 = vrot.slane %v304, %v316
        %v318 = vlaneseq
        %v319 = vshrl.u32 %v318, 7
        %v320 = vsub.s32 0, %v319
        %v321 = vrot.slane %v311, %v320
        %v322 = vlaneseq
        %v323 = vshrl.u32 %v322, 7
        %v324 = vsub.s32 0, %v323
        %v325 = vrot.slane %v312, %v324
        %v326 = vlaneseq
        %v327 = vshrl.u32 %v326, 7
        %v328 = vsub.s32 0, %v327
        %v329 = vrot.slane %v313, %v328
        %330 = vset.pattern.permute.xlu0 0
        %331 = vperm.xlu0 %330, %v317
        %v332 = vpop.permute.xlu0 %331
        %334 = vset.pattern.permute.xlu0 0
        %335 = vperm.xlu0 %334, %v321
        %v336 = vpop.permute.xlu0 %335
        %338 = vset.pattern.permute.xlu0 0
        %339 = vperm.xlu0 %338, %v325
        %v340 = vpop.permute.xlu0 %339
        %342 = vset.pattern.permute.xlu0 0
        %343 = vperm.xlu0 %342, %v329
        %v344 = vpop.permute.xlu0 %343
        %v346 = vmul.f32 %v287, %v332
        %v347 = vmul.f32 %v287, %v336
        %v348 = vmul.f32 %v287, %v340
        %v349 = vmul.f32 %v287, %v344
        %v350 = vmul.f32 %v346, 1.442695
        %v351 = vpow.pop %v350
        %v352 = vmul.f32 %v347, 1.442695
        %v353 = vpow.pop %v352
        %v354 = vmul.f32 %v348, 1.442695
        %v355 = vpow.pop %v354
        %v356 = vmul.f32 %v349, 1.442695
        %v357 = vpow.pop %v356
        %v358 = vld [vmem:[%s272] sm:$0x1]
        %s359 = sld [smem:[#allocation2]]
        %v360 = vstv %s359
        %vm361 = vcmask 261120
        %v363 = vsel %vm361, %v358, 0
        %365 = vmatprep.subr.mxu0 0.0
        %366 = vmatpush1.msra.mxu0 0.0
        %367 = vmatprep.subr.mxu0 0.0
        %368 = vmatpush1.msra.mxu0 0.0
        %369 = vmatprep.subr.mxu0 0.0
        %370 = vmatpush1.msra.mxu0 0.0
        %371 = vmatprep.subr.mxu0 0.0
        %372 = vmatpush1.msra.mxu0 0.0
        %373 = vmatprep.subr.mxu0 0.0
        %374 = vmatpush1.msra.mxu0 0.0
        %375 = vmatprep.subr.mxu0 0.0
        %376 = vmatpush1.msra.mxu0 0.0
        %377 = vmatprep.subr.mxu0 0.0
        %378 = vmatpush1.msra.mxu0 0.0
        %379 = vmatprep.subr.mxu0 0.0
        %380 = vmatpush1.msra.mxu0 0.0
        %381 = vmatprep.subr.mxu0 0.0
        %382 = vmatpush1.msra.mxu0 0.0
        %383 = vmatprep.subr.mxu0 0.0
        %384 = vmatpush1.msra.mxu0 0.0
        %385 = vmatprep.subr.mxu0 0.0
        %386 = vmatpush1.msra.mxu0 0.0
        %387 = vmatprep.subr.mxu0 0.0
        %388 = vmatpush1.msra.mxu0 0.0
        %389 = vmatprep.subr.mxu0 0.0
        %v390 = vand.u32 %v357, 4294901760
        %391 = vmatpush1.msra.mxu0 %v390
        %392 = vmatprep.subr.mxu0 0.0
        %v393 = vand.u32 %v355, 4294901760
        %394 = vmatpush1.msra.mxu0 %v393
        %395 = vmatprep.subr.mxu0 0.0
        %v396 = vand.u32 %v353, 4294901760
        %397 = vmatpush1.msra.mxu0 %v396
        %398 = vmatprep.subr.mxu0 0.0
        %v399 = vand.u32 %v351, 4294901760
        %400 = vmatpush1.msra.mxu0 %v399
        %401 = vmatprep.subr.mxu0 0.0
        %402 = vmatpush2.msra.mxu0 0.0
        %403 = vmatprep.subr.mxu0 0.0
        %404 = vmatpush2.msra.mxu0 0.0
        %405 = vmatprep.subr.mxu0 0.0
        %406 = vmatpush2.msra.mxu0 0.0
        %407 = vmatprep.subr.mxu0 0.0
        %408 = vmatpush2.msra.mxu0 0.0
        %409 = vmatprep.subr.mxu0 0.0
        %410 = vmatpush2.msra.mxu0 0.0
        %411 = vmatprep.subr.mxu0 0.0
        %412 = vmatpush2.msra.mxu0 0.0
        %413 = vmatprep.subr.mxu0 0.0
        %414 = vmatpush2.msra.mxu0 0.0
        %415 = vmatprep.subr.mxu0 0.0
        %416 = vmatpush2.msra.mxu0 0.0
        %417 = vmatprep.subr.mxu0 0.0
        %418 = vmatpush2.msra.mxu0 0.0
        %419 = vmatprep.subr.mxu0 0.0
        %420 = vmatpush2.msra.mxu0 0.0
        %421 = vmatprep.subr.mxu0 0.0
        %422 = vmatpush2.msra.mxu0 0.0
        %423 = vmatprep.subr.mxu0 0.0
        %424 = vmatpush2.msra.mxu0 0.0
        %425 = vmatprep.subr.mxu0 0.0
        %426 = vmatpush2.msra.mxu0 0.0
        %427 = vmatprep.subr.mxu0 0.0
        %428 = vmatpush2.msra.mxu0 0.0
        %429 = vmatprep.subr.mxu0 0.0
        %430 = vmatpush2.msra.mxu0 0.0
        %431 = vmatprep.subr.mxu0 0.0
        %432 = vmatpush2.msra.mxu0 0.0
        %433 = vmatprep.mubr.f32.mxu0 0.0
        %v434 = vand.u32 %v363, 4294901760
        %v435 = vsub.f32 %v363, %v434
        %v436 = vand.u32 %v435, 4294901760
        %v437 = vsub.f32 %v435, %v436
        %v438 = vand.u32 %v437, 4294901760
        %439 = vmatmul.mubr.f32.gmra.mxu0 %v438
        %v440 = vpop.f32.mrf.mxu0
        %v441 = vadd.f32 %v360, %v440
        %v442 = vpop.f32.mrf.mxu0
        %443 = vdwg.mxu0
        %444 = vmatprep.subr.mxu0 0.0
        %445 = vmatpush1.msra.mxu0 0.0
        %446 = vmatprep.subr.mxu0 0.0
        %447 = vmatpush1.msra.mxu0 0.0
        %448 = vmatprep.subr.mxu0 0.0
        %449 = vmatpush1.msra.mxu0 0.0
        %450 = vmatprep.subr.mxu0 0.0
        %451 = vmatpush1.msra.mxu0 0.0
        %452 = vmatprep.subr.mxu0 0.0
        %453 = vmatpush1.msra.mxu0 0.0
        %454 = vmatprep.subr.mxu0 0.0
        %455 = vmatpush1.msra.mxu0 0.0
        %456 = vmatprep.subr.mxu0 0.0
        %457 = vmatpush1.msra.mxu0 0.0
        %458 = vmatprep.subr.mxu0 0.0
        %459 = vmatpush1.msra.mxu0 0.0
        %460 = vmatprep.subr.mxu0 0.0
        %461 = vmatpush1.msra.mxu0 0.0
        %462 = vmatprep.subr.mxu0 0.0
        %463 = vmatpush1.msra.mxu0 0.0
        %464 = vmatprep.subr.mxu0 0.0
        %465 = vmatpush1.msra.mxu0 0.0
        %466 = vmatprep.subr.mxu0 0.0
        %467 = vmatpush1.msra.mxu0 0.0
        %468 = vmatprep.subr.mxu0 0.0
        %v469 = vand.u32 %v357, 4294901760
        %v470 = vsub.f32 %v357, %v469
        %v471 = vand.u32 %v470, 4294901760
        %v472 = vsub.f32 %v470, %v471
        %v473 = vand.u32 %v472, 4294901760
        %474 = vmatpush1.msra.mxu0 %v473
        %475 = vmatprep.subr.mxu0 0.0
        %v476 = vand.u32 %v355, 4294901760
        %v477 = vsub.f32 %v355, %v476
        %v478 = vand.u32 %v477, 4294901760
        %v479 = vsub.f32 %v477, %v478
        %v480 = vand.u32 %v479, 4294901760
        %481 = vmatpush1.msra.mxu0 %v480
        %482 = vmatprep.subr.mxu0 0.0
        %v483 = vand.u32 %v353, 4294901760
        %v484 = vsub.f32 %v353, %v483
        %v485 = vand.u32 %v484, 4294901760
        %v486 = vsub.f32 %v484, %v485
        %v487 = vand.u32 %v486, 4294901760
        %488 = vmatpush1.msra.mxu0 %v487
        %489 = vmatprep.subr.mxu0 0.0
        %v490 = vand.u32 %v351, 4294901760
        %v491 = vsub.f32 %v351, %v490
        %v492 = vand.u32 %v491, 4294901760
        %v493 = vsub.f32 %v491, %v492
        %v494 = vand.u32 %v493, 4294901760
        %495 = vmatpush1.msra.mxu0 %v494
        %496 = vmatprep.subr.mxu0 0.0
        %497 = vmatpush2.msra.mxu0 0.0
        %498 = vmatprep.subr.mxu0 0.0
        %499 = vmatpush2.msra.mxu0 0.0
        %500 = vmatprep.subr.mxu0 0.0
        %501 = vmatpush2.msra.mxu0 0.0
        %502 = vmatprep.subr.mxu0 0.0
        %503 = vmatpush2.msra.mxu0 0.0
        %504 = vmatprep.subr.mxu0 0.0
        %505 = vmatpush2.msra.mxu0 0.0
        %506 = vmatprep.subr.mxu0 0.0
        %507 = vmatpush2.msra.mxu0 0.0
        %508 = vmatprep.subr.mxu0 0.0
        %509 = vmatpush2.msra.mxu0 0.0
        %510 = vmatprep.subr.mxu0 0.0
        %511 = vmatpush2.msra.mxu0 0.0
        %512 = vmatprep.subr.mxu0 0.0
        %513 = vmatpush2.msra.mxu0 0.0
        %514 = vmatprep.subr.mxu0 0.0
        %515 = vmatpush2.msra.mxu0 0.0
        %516 = vmatprep.subr.mxu0 0.0
        %517 = vmatpush2.msra.mxu0 0.0
        %518 = vmatprep.subr.mxu0 0.0
        %519 = vmatpush2.msra.mxu0 0.0
        %520 = vmatprep.subr.mxu0 0.0
        %521 = vmatpush2.msra.mxu0 0.0
        %522 = vmatprep.subr.mxu0 0.0
        %523 = vmatpush2.msra.mxu0 0.0
        %524 = vmatprep.subr.mxu0 0.0
        %525 = vmatpush2.msra.mxu0 0.0
        %526 = vmatprep.subr.mxu0 0.0
        %527 = vmatpush2.msra.mxu0 0.0
        %528 = vmatprep.mubr.f32.mxu0 0.0
        %v529 = vand.u32 %v363, 4294901760
        %530 = vmatmul.mubr.f32.gmra.mxu0 %v529
        %v531 = vpop.f32.mrf.mxu0
        %v532 = vadd.f32 %v441, %v531
        %v533 = vpop.f32.mrf.mxu0
        %534 = vdwg.mxu0
        %535 = vmatprep.subr.mxu0 0.0
        %536 = vmatpush1.msra.mxu0 0.0
        %537 = vmatprep.subr.mxu0 0.0
        %538 = vmatpush1.msra.mxu0 0.0
        %539 = vmatprep.subr.mxu0 0.0
        %540 = vmatpush1.msra.mxu0 0.0
        %541 = vmatprep.subr.mxu0 0.0
        %542 = vmatpush1.msra.mxu0 0.0
        %543 = vmatprep.subr.mxu0 0.0
        %544 = vmatpush1.msra.mxu0 0.0
        %545 = vmatprep.subr.mxu0 0.0
        %546 = vmatpush1.msra.mxu0 0.0
        %547 = vmatprep.subr.mxu0 0.0
        %548 = vmatpush1.msra.mxu0 0.0
        %549 = vmatprep.subr.mxu0 0.0
        %550 = vmatpush1.msra.mxu0 0.0
        %551 = vmatprep.subr.mxu0 0.0
        %552 = vmatpush1.msra.mxu0 0.0
        %553 = vmatprep.subr.mxu0 0.0
        %554 = vmatpush1.msra.mxu0 0.0
        %555 = vmatprep.subr.mxu0 0.0
        %556 = vmatpush1.msra.mxu0 0.0
        %557 = vmatprep.subr.mxu0 0.0
        %558 = vmatpush1.msra.mxu0 0.0
        %559 = vmatprep.subr.mxu0 0.0
        %v560 = vand.u32 %v357, 4294901760
        %v561 = vsub.f32 %v357, %v560
        %562 = vmatpush1.msra.mxu0 %v561
        %563 = vmatprep.subr.mxu0 0.0
        %v564 = vand.u32 %v355, 4294901760
        %v565 = vsub.f32 %v355, %v564
        %566 = vmatpush1.msra.mxu0 %v565
        %567 = vmatprep.subr.mxu0 0.0
        %v568 = vand.u32 %v353, 4294901760
        %v569 = vsub.f32 %v353, %v568
        %570 = vmatpush1.msra.mxu0 %v569
        %571 = vmatprep.subr.mxu0 0.0
        %v572 = vand.u32 %v351, 4294901760
        %v573 = vsub.f32 %v351, %v572
        %574 = vmatpush1.msra.mxu0 %v573
        %575 = vmatprep.subr.mxu0 0.0
        %576 = vmatpush2.msra.mxu0 0.0
        %577 = vmatprep.subr.mxu0 0.0
        %578 = vmatpush2.msra.mxu0 0.0
        %579 = vmatprep.subr.mxu0 0.0
        %580 = vmatpush2.msra.mxu0 0.0
        %581 = vmatprep.subr.mxu0 0.0
        %582 = vmatpush2.msra.mxu0 0.0
        %583 = vmatprep.subr.mxu0 0.0
        %584 = vmatpush2.msra.mxu0 0.0
        %585 = vmatprep.subr.mxu0 0.0
        %586 = vmatpush2.msra.mxu0 0.0
        %587 = vmatprep.subr.mxu0 0.0
        %588 = vmatpush2.msra.mxu0 0.0
        %589 = vmatprep.subr.mxu0 0.0
        %590 = vmatpush2.msra.mxu0 0.0
        %591 = vmatprep.subr.mxu0 0.0
        %592 = vmatpush2.msra.mxu0 0.0
        %593 = vmatprep.subr.mxu0 0.0
        %594 = vmatpush2.msra.mxu0 0.0
        %595 = vmatprep.subr.mxu0 0.0
        %596 = vmatpush2.msra.mxu0 0.0
        %597 = vmatprep.subr.mxu0 0.0
        %598 = vmatpush2.msra.mxu0 0.0
        %599 = vmatprep.subr.mxu0 0.0
        %600 = vmatpush2.msra.mxu0 0.0
        %601 = vmatprep.subr.mxu0 0.0
        %602 = vmatpush2.msra.mxu0 0.0
        %603 = vmatprep.subr.mxu0 0.0
        %604 = vmatpush2.msra.mxu0 0.0
        %605 = vmatprep.subr.mxu0 0.0
        %606 = vmatpush2.msra.mxu0 0.0
        %607 = vmatprep.mubr.f32.mxu0 0.0
        %v608 = vand.u32 %v363, 4294901760
        %v609 = vsub.f32 %v363, %v608
        %610 = vmatmul.mubr.f32.gmra.mxu0 %v609
        %v611 = vpop.f32.mrf.mxu0
        %v612 = vadd.f32 %v532, %v611
        %v613 = vpop.f32.mrf.mxu0
        %614 = vdwg.mxu0
        %615 = vmatprep.subr.mxu0 0.0
        %616 = vmatpush1.msra.mxu0 0.0
        %617 = vmatprep.subr.mxu0 0.0
        %618 = vmatpush1.msra.mxu0 0.0
        %619 = vmatprep.subr.mxu0 0.0
        %620 = vmatpush1.msra.mxu0 0.0
        %621 = vmatprep.subr.mxu0 0.0
        %622 = vmatpush1.msra.mxu0 0.0
        %623 = vmatprep.subr.mxu0 0.0
        %624 = vmatpush1.msra.mxu0 0.0
        %625 = vmatprep.subr.mxu0 0.0
        %626 = vmatpush1.msra.mxu0 0.0
        %627 = vmatprep.subr.mxu0 0.0
        %628 = vmatpush1.msra.mxu0 0.0
        %629 = vmatprep.subr.mxu0 0.0
        %630 = vmatpush1.msra.mxu0 0.0
        %631 = vmatprep.subr.mxu0 0.0
        %632 = vmatpush1.msra.mxu0 0.0
        %633 = vmatprep.subr.mxu0 0.0
        %634 = vmatpush1.msra.mxu0 0.0
        %635 = vmatprep.subr.mxu0 0.0
        %636 = vmatpush1.msra.mxu0 0.0
        %637 = vmatprep.subr.mxu0 0.0
        %638 = vmatpush1.msra.mxu0 0.0
        %639 = vmatprep.subr.mxu0 0.0
        %v640 = vand.u32 %v357, 4294901760
        %641 = vmatpush1.msra.mxu0 %v640
        %642 = vmatprep.subr.mxu0 0.0
        %v643 = vand.u32 %v355, 4294901760
        %644 = vmatpush1.msra.mxu0 %v643
        %645 = vmatprep.subr.mxu0 0.0
        %v646 = vand.u32 %v353, 4294901760
        %647 = vmatpush1.msra.mxu0 %v646
        %648 = vmatprep.subr.mxu0 0.0
        %v649 = vand.u32 %v351, 4294901760
        %650 = vmatpush1.msra.mxu0 %v649
        %651 = vmatprep.subr.mxu0 0.0
        %652 = vmatpush2.msra.mxu0 0.0
        %653 = vmatprep.subr.mxu0 0.0
        %654 = vmatpush2.msra.mxu0 0.0
        %655 = vmatprep.subr.mxu0 0.0
        %656 = vmatpush2.msra.mxu0 0.0
        %657 = vmatprep.subr.mxu0 0.0
        %658 = vmatpush2.msra.mxu0 0.0
        %659 = vmatprep.subr.mxu0 0.0
        %660 = vmatpush2.msra.mxu0 0.0
        %661 = vmatprep.subr.mxu0 0.0
        %662 = vmatpush2.msra.mxu0 0.0
        %663 = vmatprep.subr.mxu0 0.0
        %664 = vmatpush2.msra.mxu0 0.0
        %665 = vmatprep.subr.mxu0 0.0
        %666 = vmatpush2.msra.mxu0 0.0
        %667 = vmatprep.subr.mxu0 0.0
        %668 = vmatpush2.msra.mxu0 0.0
        %669 = vmatprep.subr.mxu0 0.0
        %670 = vmatpush2.msra.mxu0 0.0
        %671 = vmatprep.subr.mxu0 0.0
        %672 = vmatpush2.msra.mxu0 0.0
        %673 = vmatprep.subr.mxu0 0.0
        %674 = vmatpush2.msra.mxu0 0.0
        %675 = vmatprep.subr.mxu0 0.0
        %676 = vmatpush2.msra.mxu0 0.0
        %677 = vmatprep.subr.mxu0 0.0
        %678 = vmatpush2.msra.mxu0 0.0
        %679 = vmatprep.subr.mxu0 0.0
        %680 = vmatpush2.msra.mxu0 0.0
        %681 = vmatprep.subr.mxu0 0.0
        %682 = vmatpush2.msra.mxu0 0.0
        %683 = vmatprep.mubr.f32.mxu0 0.0
        %v684 = vand.u32 %v363, 4294901760
        %v685 = vsub.f32 %v363, %v684
        %v686 = vand.u32 %v685, 4294901760
        %687 = vmatmul.mubr.f32.gmra.mxu0 %v686
        %v688 = vpop.f32.mrf.mxu0
        %v689 = vadd.f32 %v612, %v688
        %v690 = vpop.f32.mrf.mxu0
        %691 = vdwg.mxu0
        %692 = vmatprep.subr.mxu0 0.0
        %693 = vmatpush1.msra.mxu0 0.0
        %694 = vmatprep.subr.mxu0 0.0
        %695 = vmatpush1.msra.mxu0 0.0
        %696 = vmatprep.subr.mxu0 0.0
        %697 = vmatpush1.msra.mxu0 0.0
        %698 = vmatprep.subr.mxu0 0.0
        %699 = vmatpush1.msra.mxu0 0.0
        %700 = vmatprep.subr.mxu0 0.0
        %701 = vmatpush1.msra.mxu0 0.0
        %702 = vmatprep.subr.mxu0 0.0
        %703 = vmatpush1.msra.mxu0 0.0
        %704 = vmatprep.subr.mxu0 0.0
        %705 = vmatpush1.msra.mxu0 0.0
        %706 = vmatprep.subr.mxu0 0.0
        %707 = vmatpush1.msra.mxu0 0.0
        %708 = vmatprep.subr.mxu0 0.0
        %709 = vmatpush1.msra.mxu0 0.0
        %710 = vmatprep.subr.mxu0 0.0
        %711 = vmatpush1.msra.mxu0 0.0
        %712 = vmatprep.subr.mxu0 0.0
        %713 = vmatpush1.msra.mxu0 0.0
        %714 = vmatprep.subr.mxu0 0.0
        %715 = vmatpush1.msra.mxu0 0.0
        %716 = vmatprep.subr.mxu0 0.0
        %v717 = vand.u32 %v357, 4294901760
        %v718 = vsub.f32 %v357, %v717
        %v719 = vand.u32 %v718, 4294901760
        %720 = vmatpush1.msra.mxu0 %v719
        %721 = vmatprep.subr.mxu0 0.0
        %v722 = vand.u32 %v355, 4294901760
        %v723 = vsub.f32 %v355, %v722
        %v724 = vand.u32 %v723, 4294901760
        %725 = vmatpush1.msra.mxu0 %v724
        %726 = vmatprep.subr.mxu0 0.0
        %v727 = vand.u32 %v353, 4294901760
        %v728 = vsub.f32 %v353, %v727
        %v729 = vand.u32 %v728, 4294901760
        %730 = vmatpush1.msra.mxu0 %v729
        %731 = vmatprep.subr.mxu0 0.0
        %v732 = vand.u32 %v351, 4294901760
        %v733 = vsub.f32 %v351, %v732
        %v734 = vand.u32 %v733, 4294901760
        %735 = vmatpush1.msra.mxu0 %v734
        %736 = vmatprep.subr.mxu0 0.0
        %737 = vmatpush2.msra.mxu0 0.0
        %738 = vmatprep.subr.mxu0 0.0
        %739 = vmatpush2.msra.mxu0 0.0
        %740 = vmatprep.subr.mxu0 0.0
        %741 = vmatpush2.msra.mxu0 0.0
        %742 = vmatprep.subr.mxu0 0.0
        %743 = vmatpush2.msra.mxu0 0.0
        %744 = vmatprep.subr.mxu0 0.0
        %745 = vmatpush2.msra.mxu0 0.0
        %746 = vmatprep.subr.mxu0 0.0
        %747 = vmatpush2.msra.mxu0 0.0
        %748 = vmatprep.subr.mxu0 0.0
        %749 = vmatpush2.msra.mxu0 0.0
        %750 = vmatprep.subr.mxu0 0.0
        %751 = vmatpush2.msra.mxu0 0.0
        %752 = vmatprep.subr.mxu0 0.0
        %753 = vmatpush2.msra.mxu0 0.0
        %754 = vmatprep.subr.mxu0 0.0
        %755 = vmatpush2.msra.mxu0 0.0
        %756 = vmatprep.subr.mxu0 0.0
        %757 = vmatpush2.msra.mxu0 0.0
        %758 = vmatprep.subr.mxu0 0.0
        %759 = vmatpush2.msra.mxu0 0.0
        %760 = vmatprep.subr.mxu0 0.0
        %761 = vmatpush2.msra.mxu0 0.0
        %762 = vmatprep.subr.mxu0 0.0
        %763 = vmatpush2.msra.mxu0 0.0
        %764 = vmatprep.subr.mxu0 0.0
        %765 = vmatpush2.msra.mxu0 0.0
        %766 = vmatprep.subr.mxu0 0.0
        %767 = vmatpush2.msra.mxu0 0.0
        %768 = vmatprep.mubr.f32.mxu0 0.0
        %v769 = vand.u32 %v363, 4294901760
        %770 = vmatmul.mubr.f32.gmra.mxu0 %v769
        %v771 = vpop.f32.mrf.mxu0
        %v772 = vadd.f32 %v689, %v771
        %v773 = vpop.f32.mrf.mxu0
        %774 = vdwg.mxu0
        %775 = vmatprep.subr.mxu0 0.0
        %776 = vmatpush1.msra.mxu0 0.0
        %777 = vmatprep.subr.mxu0 0.0
        %778 = vmatpush1.msra.mxu0 0.0
        %779 = vmatprep.subr.mxu0 0.0
        %780 = vmatpush1.msra.mxu0 0.0
        %781 = vmatprep.subr.mxu0 0.0
        %782 = vmatpush1.msra.mxu0 0.0
        %783 = vmatprep.subr.mxu0 0.0
        %784 = vmatpush1.msra.mxu0 0.0
        %785 = vmatprep.subr.mxu0 0.0
        %786 = vmatpush1.msra.mxu0 0.0
        %787 = vmatprep.subr.mxu0 0.0
        %788 = vmatpush1.msra.mxu0 0.0
        %789 = vmatprep.subr.mxu0 0.0
        %790 = vmatpush1.msra.mxu0 0.0
        %791 = vmatprep.subr.mxu0 0.0
        %792 = vmatpush1.msra.mxu0 0.0
        %793 = vmatprep.subr.mxu0 0.0
        %794 = vmatpush1.msra.mxu0 0.0
        %795 = vmatprep.subr.mxu0 0.0
        %796 = vmatpush1.msra.mxu0 0.0
        %797 = vmatprep.subr.mxu0 0.0
        %798 = vmatpush1.msra.mxu0 0.0
        %799 = vmatprep.subr.mxu0 0.0
        %v800 = vand.u32 %v357, 4294901760
        %801 = vmatpush1.msra.mxu0 %v800
        %802 = vmatprep.subr.mxu0 0.0
        %v803 = vand.u32 %v355, 4294901760
        %804 = vmatpush1.msra.mxu0 %v803
        %805 = vmatprep.subr.mxu0 0.0
        %v806 = vand.u32 %v353, 4294901760
        %807 = vmatpush1.msra.mxu0 %v806
        %808 = vmatprep.subr.mxu0 0.0
        %v809 = vand.u32 %v351, 4294901760
        %810 = vmatpush1.msra.mxu0 %v809
        %811 = vmatprep.subr.mxu0 0.0
        %812 = vmatpush2.msra.mxu0 0.0
        %813 = vmatprep.subr.mxu0 0.0
        %814 = vmatpush2.msra.mxu0 0.0
        %815 = vmatprep.subr.mxu0 0.0
        %816 = vmatpush2.msra.mxu0 0.0
        %817 = vmatprep.subr.mxu0 0.0
        %818 = vmatpush2.msra.mxu0 0.0
        %819 = vmatprep.subr.mxu0 0.0
        %820 = vmatpush2.msra.mxu0 0.0
        %821 = vmatprep.subr.mxu0 0.0
        %822 = vmatpush2.msra.mxu0 0.0
        %823 = vmatprep.subr.mxu0 0.0
        %824 = vmatpush2.msra.mxu0 0.0
        %825 = vmatprep.subr.mxu0 0.0
        %826 = vmatpush2.msra.mxu0 0.0
        %827 = vmatprep.subr.mxu0 0.0
        %828 = vmatpush2.msra.mxu0 0.0
        %829 = vmatprep.subr.mxu0 0.0
        %830 = vmatpush2.msra.mxu0 0.0
        %831 = vmatprep.subr.mxu0 0.0
        %832 = vmatpush2.msra.mxu0 0.0
        %833 = vmatprep.subr.mxu0 0.0
        %834 = vmatpush2.msra.mxu0 0.0
        %835 = vmatprep.subr.mxu0 0.0
        %836 = vmatpush2.msra.mxu0 0.0
        %837 = vmatprep.subr.mxu0 0.0
        %838 = vmatpush2.msra.mxu0 0.0
        %839 = vmatprep.subr.mxu0 0.0
        %840 = vmatpush2.msra.mxu0 0.0
        %841 = vmatprep.subr.mxu0 0.0
        %842 = vmatpush2.msra.mxu0 0.0
        %843 = vmatprep.mubr.f32.mxu0 0.0
        %v844 = vand.u32 %v363, 4294901760
        %845 = vmatmul.mubr.f32.gmra.mxu0 %v844
        %v846 = vpop.f32.mrf.mxu0
        %v847 = vadd.f32 %v772, %v846
        %v848 = vpop.f32.mrf.mxu0
        %849 = vdwg.mxu0
        %850 = vst [vmem:[%s259] sm:$0x1] %v847
        %s851 = sand.u32 %s164, 1
        %s852 = scalar_lea.sflag [#allocation4], %s851
        %s853 = sand.u32 %s164, 1
        %s854 = scalar_lea.vmem [#allocation3], %s853
        // Predicated region
        $region41: #{tpu_custom_call.1} parent=39 // pred_check
          %p855 = pneg %p174
        $region42: #{tpu_custom_call.1} parent=39 // pred_check_branch
          %857 = sbr.rel (%p855) target = $region44
        $region43: #{tpu_custom_call.1} parent=39 // pred_region
          %s859 = ssub.s32 16, 16
          %860 = vsyncadd %s852, %s859
          %s861 = sadd.s32 %s25, %s24
          %s862 = smul.addr %s861, 16
          %s863 = scalar_lea.hbm %s5, %s862
          %s865 = sshll.u32 %s854, 4
          %s866 = int_to_ptr.vmem [resolvable:$true] %s865
          %868 = dma.vmem_to_hbm [thread:$0]  %s866, 16, %s863, %s852
        $region44: #{tpu_custom_call.1} parent=39 // pred_fallthru
          _
      $region40: #{tpu_custom_call.1} parent=5 // pred_fallthru
        _
      %p869 = scmp.le.s32.totalorder 2, %s15
      // Predicated region
      $region45: #{tpu_custom_call.1} parent=5 // pred_check
        %p870 = pneg %p869
      $region46: #{tpu_custom_call.1} parent=5 // pred_check_branch
        %872 = sbr.rel (%p870) target = $region48
      $region47: #{tpu_custom_call.1} parent=5 // pred_region
        %s873 = ssub.s32 %s15, 2
        // Predicated region
        $region49: #{tpu_custom_call.1} parent=47 // pred_check
          %p874 = pneg %p180
        $region50: #{tpu_custom_call.1} parent=47 // pred_check_branch
          %876 = sbr.rel (%p874) target = $region52
        $region51: #{tpu_custom_call.1} parent=47 // pred_region
          %s877 = sand.u32 %s165, 1
          %s878 = scalar_lea.sflag [#allocation4], %s877
          %s879 = sand.u32 %s165, 1
          %s880 = scalar_lea.vmem [#allocation3], %s879
          %881 = dma.done %s878, 16
        $region52: #{tpu_custom_call.1} parent=47 // pred_fallthru
          _
      $region48: #{tpu_custom_call.1} parent=5 // pred_fallthru
        _
    $region6: #{tpu_custom_call.1} parent=1 // loop_footer
      %s19 = sadd.s32 1, %s15
    $region7: #{tpu_custom_call.1} parent=1 // loop_footer_branch
      %14 = sbr.rel target = $region3
    $region8: #{tpu_custom_call.1} parent=1 // loop_exit
      _
    %882 = vsyncpa [#allocation4], 1
    %s883 = scalar_lea.sflag [#allocation4], 1
    %884 = vsyncpa %s883, 1

</llo_original>
